<compile_context>
chip_gen: v6e
topology: v6e:2x2x1
jax: 0.10.0
libtpu: 0.0.40
codegen_flags: <defaults>
</compile_context>

<pallas_src>
import jax
import jax.numpy as jnp
from jax import lax
from jax.experimental import pallas as pl
from jax.experimental.pallas import tpu as pltpu


def _round_up(a, m):
    return (a + m - 1) // m * m


def _make_gau_kernel(ws, Lp, ch_b, clq_b):
    def kernel(lowq_ref, hp_ref, wh_ref, wl_ref, vec_ref, out_ref, rhsh_ref, rhsl_ref):
        # lowq_ref: (1, clq_b, P_pad) bf16  parity-merged, padded low planes (row-flattened)
        # hp_ref:   (1, ch_b,  P_pad) bf16  padded high features (row-flattened)
        # wh_ref:   (Mo, 9*ch_b)      bf16  phase-stacked convT weights, BN_up scale folded
        # wl_ref:   (Mo, 9*clq_b)     bf16  phase-stacked 3x3 weights,  BN_low scale folded
        # vec_ref:  (1, 2, Mo, 1)     f32   [gate, bn_up_bias + bn_low_bias*gate] per batch
        # out_ref:  (1, Mo, Lp)       f32   phase-merged output (lane-dense, 128-aligned)
        # rhsh_ref: (9*ch_b, Lp)      bf16  scratch: stacked high-branch taps
        # rhsl_ref: (9*clq_b, Lp)     bf16  scratch: stacked low-branch taps

        # Build the stacked RHS once: 9 tap offsets (row, col) in {0,1,2}^2 of the
        # flattened padded planes; each copy is a full 16-sublane, 128-lane tile.
        for t in range(9):
            off = (t // 3) * ws + (t % 3)
            rhsh_ref[pl.ds(t * ch_b, ch_b), :] = hp_ref[0, :, pl.ds(off, Lp)]
            rhsl_ref[pl.ds(t * clq_b, clq_b), :] = lowq_ref[0, :, pl.ds(off, Lp)]

        # Two deep matmuls instead of 52 shallow ones; f32 accumulation in vregs.
        up = jnp.dot(wh_ref[...], rhsh_ref[...], preferred_element_type=jnp.float32)
        low = jnp.dot(wl_ref[...], rhsl_ref[...], preferred_element_type=jnp.float32)

        gate = vec_ref[0, 0]     # (Mo, 1)
        cbias = vec_ref[0, 1]    # (Mo, 1)
        out_ref[0] = jnp.maximum(up + gate * low + cbias, 0.0).astype(out_ref.dtype)

    return kernel


def gau_pallas(fms_high, fms_low, params):
    """fms_high: (b, ch, h, w) NCHW, fms_low: (b, cl, 2h, 2w) NCHW -> (b, cl, 2h, 2w)."""
    eps = 1e-5
    b, ch, h, w = fms_high.shape
    _, cl, H, W = fms_low.shape
    assert H == 2 * h and W == 2 * w, "upsample=True expects low-res spatial = 2x high-res"

    f32, bf16 = jnp.float32, jnp.bfloat16
    ws = w + 2                                   # row stride of the flattened padded planes
    Lp = _round_up(h * ws, 128)                  # flattened output lanes (128-aligned)
    P_pad = _round_up(Lp + 2 * ws + 2, 128)      # input lanes incl. max tap offset (2*ws+2)
    ch_b = _round_up(ch, 16)                     # bf16 sublane-tile aligned channel counts
    clq_b = _round_up(4 * cl, 16)
    Mo = _round_up(4 * cl, 8)                    # output rows: phase-major x channel

    def fold_bn(g, b_, m, v):
        s = g / jnp.sqrt(v + eps)
        return s.astype(f32), (b_ - m * s).astype(f32)

    sh, bh = fold_bn(params['bn_high_g'], params['bn_high_b'], params['bn_high_m'], params['bn_high_v'])
    sl, bl = fold_bn(params['bn_low_g'], params['bn_low_b'], params['bn_low_m'], params['bn_low_v'])
    su, bu = fold_bn(params['bn_up_g'], params['bn_up_b'], params['bn_up_m'], params['bn_up_v'])

    # ---- gate branch (tiny) in plain XLA: GAP -> 1x1 -> BN -> LeakyReLU(0.2) ----
    gp = jnp.mean(fms_high.astype(f32), axis=(2, 3))                          # (b, ch)
    w1m = params['w1'][:, :, 0, 0].astype(f32)                                # (cl, ch)
    gate = jnp.einsum('bi,oi->bo', gp, w1m, precision=lax.Precision.HIGHEST)
    gate = gate * sh[None, :] + bh[None, :]
    gate = jnp.where(gate >= 0.0, gate, 0.2 * gate)                           # (b, cl)
    cbias = bu[None, :] + bl[None, :] * gate                                  # (b, cl)
    gate_m = jnp.pad(jnp.tile(gate, (1, 4)), ((0, 0), (0, Mo - 4 * cl)))      # row m=p*cl+o -> gate[o]
    cbias_m = jnp.pad(jnp.tile(cbias, (1, 4)), ((0, 0), (0, Mo - 4 * cl)))
    vec = jnp.stack([gate_m, cbias_m], axis=1)[..., None].astype(f32)         # (b, 2, Mo, 1)

    # ---- low features: pad 1, split into 4 stride-2 parity planes merged onto the
    #      channel (sublane) axis, pad each plane to (h+2, ws), row-flatten, pad lanes ----
    low_pad = jnp.pad(fms_low, ((0, 0), (0, 0), (1, 1), (1, 1)))              # (b, cl, 2h+2, 2w+2)
    planes = []
    for qy in range(2):
        for qx in range(2):
            pq = low_pad[:, :, qy::2, qx::2]                                   # (b, cl, h+1, w+1)
            planes.append(jnp.pad(pq, ((0, 0), (0, 0), (0, 1), (0, 1))))       # (b, cl, h+2, ws)
    lowq = jnp.concatenate(planes, axis=1).reshape(b, 4 * cl, (h + 2) * ws)    # q-major: row q*cl+i
    lowq = jnp.pad(lowq, ((0, 0), (0, clq_b - 4 * cl), (0, P_pad - (h + 2) * ws))).astype(bf16)

    # ---- high features: pad 1, row-flatten, pad channels/lanes (no dilated tensor) ----
    hp = jnp.pad(fms_high, ((0, 0), (0, 0), (1, 1), (1, 1))).reshape(b, ch, (h + 2) * ws)
    hp = jnp.pad(hp, ((0, 0), (0, ch_b - ch), (0, P_pad - (h + 2) * ws))).astype(bf16)

    # ---- weights: phase-decomposed convT (2x2 per phase) + 3x3 conv, stacked over
    #      the union of the 9 tap offsets (structured zeros), BN scales folded ----
    wt_f = params['wt'].astype(f32)                                            # (ch, cl, 4, 4) ConvT (I,O,kH,kW)
    w3_f = params['w3'].astype(f32)                                            # (cl, cl, 3, 3) Conv  (O,I,kH,kW)
    wh = jnp.zeros((Mo, 9 * ch_b), f32)
    wl = jnp.zeros((Mo, 9 * clq_b), f32)
    for py in range(2):
        for px in range(2):
            p = py * 2 + px
            for dy in range(2):                                                # high branch taps
                for dx in range(2):
                    t = (py + dy) * 3 + (px + dx)
                    ky, kx = 3 - py - 2 * dy, 3 - px - 2 * dx
                    blk = wt_f[:, :, ky, kx].T * su[:, None]                   # (cl_out, ch_in)
                    wh = wh.at[p * cl:(p + 1) * cl, t * ch_b:t * ch_b + ch].set(blk)
            for ky in range(3):                                                # low branch taps
                for kx in range(3):
                    sy, sx = py + ky, px + kx
                    q = (sy & 1) * 2 + (sx & 1)
                    t = (sy >> 1) * 3 + (sx >> 1)
                    blk = w3_f[:, :, ky, kx] * sl[:, None]                     # (cl_out, cl_in)
                    col = t * clq_b + q * cl
                    wl = wl.at[p * cl:(p + 1) * cl, col:col + cl].set(blk)
    wh = wh.astype(bf16)
    wl = wl.astype(bf16)

    # ---- VMEM budget from actual block bytes, clamped to the device's physical VMEM ----
    try:
        vmem_cap = int(pltpu.get_tpu_info().vmem_capacity_bytes)
    except Exception:  # conservative fallback (v7x has 64 MiB per TensorCore)
        vmem_cap = 64 * 2 ** 20
    in_bytes = (clq_b + ch_b) * P_pad * 2 + (9 * ch_b + 9 * clq_b) * Mo * 2 + 2 * Mo * 128 * 4
    out_bytes = Mo * Lp * 4
    scratch_bytes = (9 * ch_b + 9 * clq_b) * Lp * 2
    need = 2 * (in_bytes + out_bytes) + scratch_bytes + (2 << 20)
    vmem_limit = int(min(max(need, 8 * 2 ** 20), int(vmem_cap * 0.75)))

    kernel = _make_gau_kernel(ws, Lp, ch_b, clq_b)
    out_phase = pl.pallas_call(
        kernel,
        out_shape=jax.ShapeDtypeStruct((b, Mo, Lp), f32),
        grid_spec=pltpu.PrefetchScalarGridSpec(
            num_scalar_prefetch=0,
            grid=(b,),
            in_specs=[
                pl.BlockSpec((1, clq_b, P_pad), lambda i: (i, 0, 0)),
                pl.BlockSpec((1, ch_b, P_pad), lambda i: (i, 0, 0)),
                pl.BlockSpec((Mo, 9 * ch_b), lambda i: (0, 0)),
                pl.BlockSpec((Mo, 9 * clq_b), lambda i: (0, 0)),
                pl.BlockSpec((1, 2, Mo, 1), lambda i: (i, 0, 0, 0)),
            ],
            out_specs=pl.BlockSpec((1, Mo, Lp), lambda i: (i, 0, 0)),
            scratch_shapes=[
                pltpu.VMEM((9 * ch_b, Lp), bf16),
                pltpu.VMEM((9 * clq_b, Lp), bf16),
            ]),
        compiler_params=pltpu.CompilerParams(
            dimension_semantics=("parallel",),
            vmem_limit_bytes=vmem_limit),
    )(lowq, hp, wh, wl, vec)

    # ---- un-phase: (b, Mo, Lp) -> (b, cl, 2h, 2w); pure XLA layout glue ----
    op = out_phase[:, :4 * cl, :h * ws].reshape(b, 2, 2, cl, h, ws)[..., :w]   # (b, py, px, cl, y, x)
    out = jnp.transpose(op, (0, 3, 4, 1, 5, 2)).reshape(b, cl, H, W)
    return out


# ---------------------------- plain-JAX reference ----------------------------
def gau_reference(fms_high, fms_low, p):
    eps = 1e-5

    def bn(x, g, b_, m, v):
        r = lambda a: a[None, :, None, None]
        return (x - r(m)) / jnp.sqrt(r(v) + eps) * r(g) + r(b_)

    dn = ('NCHW', 'OIHW', 'NCHW')
    gp = jnp.mean(fms_high, axis=(2, 3), keepdims=True)
    gp = lax.conv_general_dilated(gp, p['w1'], (1, 1), 'VALID',
                                  dimension_numbers=dn, precision=lax.Precision.HIGHEST)
    gp = bn(gp, p['bn_high_g'], p['bn_high_b'], p['bn_high_m'], p['bn_high_v'])
    gp = jnp.where(gp >= 0, gp, 0.2 * gp)

    low_mask = lax.conv_general_dilated(fms_low, p['w3'], (1, 1), ((1, 1), (1, 1)),
                                        dimension_numbers=dn, precision=lax.Precision.HIGHEST)
    low_mask = bn(low_mask, p['bn_low_g'], p['bn_low_b'], p['bn_low_m'], p['bn_low_v'])
    att = low_mask * gp

    wt_conv = jnp.flip(jnp.transpose(p['wt'], (1, 0, 2, 3)), (2, 3))           # (cl, ch, 4, 4)
    up = lax.conv_general_dilated(fms_high, wt_conv, (1, 1), ((2, 2), (2, 2)),
                                  lhs_dilation=(2, 2), dimension_numbers=dn,
                                  precision=lax.Precision.HIGHEST)
    up = bn(up, p['bn_up_g'], p['bn_up_b'], p['bn_up_m'], p['bn_up_v'])
    return jnp.maximum(up + att, 0.0)


def init_params(key, ch, cl):
    ks = jax.random.split(key, 6)
    p = {
        'w3': 0.1 * jax.random.normal(ks[0], (cl, cl, 3, 3), jnp.float32),  # Conv2d  (O, I, kH, kW)
        'w1': 0.1 * jax.random.normal(ks[1], (cl, ch, 1, 1), jnp.float32),  # Conv2d  (O, I, 1, 1)
        'wt': 0.1 * jax.random.normal(ks[2], (ch, cl, 4, 4), jnp.float32),  # ConvT2d (I, O, kH, kW)
    }

    def bn_params(k):
        k1, k2, k3, k4 = jax.random.split(k, 4)
        return (1.0 + 0.1 * jax.random.normal(k1, (cl,), jnp.float32),
                0.1 * jax.random.normal(k2, (cl,), jnp.float32),
                0.1 * jax.random.normal(k3, (cl,), jnp.float32),
                0.5 + jnp.abs(jax.random.normal(k4, (cl,), jnp.float32)))

    p['bn_low_g'], p['bn_low_b'], p['bn_low_m'], p['bn_low_v'] = bn_params(ks[3])
    p['bn_high_g'], p['bn_high_b'], p['bn_high_m'], p['bn_high_v'] = bn_params(ks[4])
    p['bn_up_g'], p['bn_up_b'], p['bn_up_m'], p['bn_up_v'] = bn_params(ks[5])
    return p


if __name__ == "__main__":
    key = jax.random.PRNGKey(0)
    k_high, k_low, k_par = jax.random.split(key, 3)

    b, ch, cl, h, w = 2, 8, 4, 8, 8                       # high: 8x8, low: 16x16
    fms_high = jax.random.normal(k_high, (b, ch, h, w), jnp.float32)
    fms_low = jax.random.normal(k_low, (b, cl, 2 * h, 2 * w), jnp.float32)
    params = init_params(k_par, ch, cl)

    out = gau_pallas(fms_high, fms_low, params)
    out = jax.block_until_ready(out)

    ref = jax.block_until_ready(gau_reference(fms_high, fms_low, params))
    assert out.shape == (b, cl, 2 * h, 2 * w), out.shape
    # bf16 MXU operands with f32 accumulation vs all-f32 HIGHEST-precision reference.
    max_err = float(jnp.max(jnp.abs(out - ref)))
    assert max_err < 3e-2, f"mismatch vs reference: max abs err = {max_err}"

    print("KERNEL_OK")
</pallas_src>

<mosaic_0001>
module attributes {stable_mosaic.version = 11 : i64} {
  func.func @kernel(%arg0: i32, %arg1: memref<1x16x256xbf16, #tpu.memory_space<vmem>>, %arg2: memref<1x16x256xbf16, #tpu.memory_space<vmem>>, %arg3: memref<16x144xbf16, #tpu.memory_space<vmem>>, %arg4: memref<16x144xbf16, #tpu.memory_space<vmem>>, %arg5: memref<1x2x16x1xf32, #tpu.memory_space<vmem>>, %arg6: memref<1x16x128xf32, #tpu.memory_space<vmem>>, %arg7: memref<144x128xbf16, #tpu.memory_space<vmem>>, %arg8: memref<144x128xbf16, #tpu.memory_space<vmem>>) attributes {dimension_semantics = [#tpu.dimension_semantics<parallel>], iteration_bounds = array<i64: 2>, scalar_prefetch = 0 : i64, scratch_operands = 2 : i64, tpu.core_type = #tpu.core_type<tc>, window_params = [{transform_indices = @transform_0, window_bounds = array<i64: 1, 16, 256>}, {transform_indices = @transform_1, window_bounds = array<i64: 1, 16, 256>}, {pipeline_mode = #tpu.pipeline_mode<synchronous>, transform_indices = @transform_2, window_bounds = array<i64: 16, 144>}, {pipeline_mode = #tpu.pipeline_mode<synchronous>, transform_indices = @transform_3, window_bounds = array<i64: 16, 144>}, {transform_indices = @transform_4, window_bounds = array<i64: 1, 2, 16, 1>}, {transform_indices = @transform_5, window_bounds = array<i64: 1, 16, 128>}]} {
    %c0 = arith.constant 0 : index
    %c0_0 = arith.constant 0 : index
    %c0_1 = arith.constant 0 : index
    %0 = vector.load %arg2[%c0, %c0_0, %c0_1] : memref<1x16x256xbf16, #tpu.memory_space<vmem>>, vector<1x16x128xbf16>
    %1 = vector.shape_cast %0 : vector<1x16x128xbf16> to vector<16x128xbf16>
    %c0_2 = arith.constant 0 : index
    %c0_3 = arith.constant 0 : index
    %2 = vector.load %arg7[%c0_2, %c0_3] : memref<144x128xbf16, #tpu.memory_space<vmem>>, vector<16x128xbf16>
    tpu.vector_store %arg7[%c0_2, %c0_3], %1 {strides = array<i32>} : memref<144x128xbf16, #tpu.memory_space<vmem>>, vector<16x128xbf16>,
    %c0_4 = arith.constant 0 : index
    %c0_5 = arith.constant 0 : index
    %c0_6 = arith.constant 0 : index
    %3 = vector.load %arg1[%c0_4, %c0_5, %c0_6] : memref<1x16x256xbf16, #tpu.memory_space<vmem>>, vector<1x16x128xbf16>
    %4 = vector.shape_cast %3 : vector<1x16x128xbf16> to vector<16x128xbf16>
    %c0_7 = arith.constant 0 : index
    %c0_8 = arith.constant 0 : index
    %5 = vector.load %arg8[%c0_7, %c0_8] : memref<144x128xbf16, #tpu.memory_space<vmem>>, vector<16x128xbf16>
    tpu.vector_store %arg8[%c0_7, %c0_8], %4 {strides = array<i32>} : memref<144x128xbf16, #tpu.memory_space<vmem>>, vector<16x128xbf16>,
    %c0_9 = arith.constant 0 : index
    %c0_10 = arith.constant 0 : index
    %c1 = arith.constant 1 : index
    %6 = vector.load %arg2[%c0_9, %c0_10, %c1] : memref<1x16x256xbf16, #tpu.memory_space<vmem>>, vector<1x16x128xbf16>
    %7 = vector.shape_cast %6 : vector<1x16x128xbf16> to vector<16x128xbf16>
    %c16 = arith.constant 16 : index
    %c0_11 = arith.constant 0 : index
    %8 = vector.load %arg7[%c16, %c0_11] : memref<144x128xbf16, #tpu.memory_space<vmem>>, vector<16x128xbf16>
    tpu.vector_store %arg7[%c16, %c0_11], %7 {strides = array<i32>} : memref<144x128xbf16, #tpu.memory_space<vmem>>, vector<16x128xbf16>,
    %c0_12 = arith.constant 0 : index
    %c0_13 = arith.constant 0 : index
    %c1_14 = arith.constant 1 : index
    %9 = vector.load %arg1[%c0_12, %c0_13, %c1_14] : memref<1x16x256xbf16, #tpu.memory_space<vmem>>, vector<1x16x128xbf16>
    %10 = vector.shape_cast %9 : vector<1x16x128xbf16> to vector<16x128xbf16>
    %c16_15 = arith.constant 16 : index
    %c0_16 = arith.constant 0 : index
    %11 = vector.load %arg8[%c16_15, %c0_16] : memref<144x128xbf16, #tpu.memory_space<vmem>>, vector<16x128xbf16>
    tpu.vector_store %arg8[%c16_15, %c0_16], %10 {strides = array<i32>} : memref<144x128xbf16, #tpu.memory_space<vmem>>, vector<16x128xbf16>,
    %c0_17 = arith.constant 0 : index
    %c0_18 = arith.constant 0 : index
    %c2 = arith.constant 2 : index
    %12 = vector.load %arg2[%c0_17, %c0_18, %c2] : memref<1x16x256xbf16, #tpu.memory_space<vmem>>, vector<1x16x128xbf16>
    %13 = vector.shape_cast %12 : vector<1x16x128xbf16> to vector<16x128xbf16>
    %c32 = arith.constant 32 : index
    %c0_19 = arith.constant 0 : index
    %14 = vector.load %arg7[%c32, %c0_19] : memref<144x128xbf16, #tpu.memory_space<vmem>>, vector<16x128xbf16>
    tpu.vector_store %arg7[%c32, %c0_19], %13 {strides = array<i32>} : memref<144x128xbf16, #tpu.memory_space<vmem>>, vector<16x128xbf16>,
    %c0_20 = arith.constant 0 : index
    %c0_21 = arith.constant 0 : index
    %c2_22 = arith.constant 2 : index
    %15 = vector.load %arg1[%c0_20, %c0_21, %c2_22] : memref<1x16x256xbf16, #tpu.memory_space<vmem>>, vector<1x16x128xbf16>
    %16 = vector.shape_cast %15 : vector<1x16x128xbf16> to vector<16x128xbf16>
    %c32_23 = arith.constant 32 : index
    %c0_24 = arith.constant 0 : index
    %17 = vector.load %arg8[%c32_23, %c0_24] : memref<144x128xbf16, #tpu.memory_space<vmem>>, vector<16x128xbf16>
    tpu.vector_store %arg8[%c32_23, %c0_24], %16 {strides = array<i32>} : memref<144x128xbf16, #tpu.memory_space<vmem>>, vector<16x128xbf16>,
    %c0_25 = arith.constant 0 : index
    %c0_26 = arith.constant 0 : index
    %c10 = arith.constant 10 : index
    %18 = vector.load %arg2[%c0_25, %c0_26, %c10] : memref<1x16x256xbf16, #tpu.memory_space<vmem>>, vector<1x16x128xbf16>
    %19 = vector.shape_cast %18 : vector<1x16x128xbf16> to vector<16x128xbf16>
    %c48 = arith.constant 48 : index
    %c0_27 = arith.constant 0 : index
    %20 = vector.load %arg7[%c48, %c0_27] : memref<144x128xbf16, #tpu.memory_space<vmem>>, vector<16x128xbf16>
    tpu.vector_store %arg7[%c48, %c0_27], %19 {strides = array<i32>} : memref<144x128xbf16, #tpu.memory_space<vmem>>, vector<16x128xbf16>,
    %c0_28 = arith.constant 0 : index
    %c0_29 = arith.constant 0 : index
    %c10_30 = arith.constant 10 : index
    %21 = vector.load %arg1[%c0_28, %c0_29, %c10_30] : memref<1x16x256xbf16, #tpu.memory_space<vmem>>, vector<1x16x128xbf16>
    %22 = vector.shape_cast %21 : vector<1x16x128xbf16> to vector<16x128xbf16>
    %c48_31 = arith.constant 48 : index
    %c0_32 = arith.constant 0 : index
    %23 = vector.load %arg8[%c48_31, %c0_32] : memref<144x128xbf16, #tpu.memory_space<vmem>>, vector<16x128xbf16>
    tpu.vector_store %arg8[%c48_31, %c0_32], %22 {strides = array<i32>} : memref<144x128xbf16, #tpu.memory_space<vmem>>, vector<16x128xbf16>,
    %c0_33 = arith.constant 0 : index
    %c0_34 = arith.constant 0 : index
    %c11 = arith.constant 11 : index
    %24 = vector.load %arg2[%c0_33, %c0_34, %c11] : memref<1x16x256xbf16, #tpu.memory_space<vmem>>, vector<1x16x128xbf16>
    %25 = vector.shape_cast %24 : vector<1x16x128xbf16> to vector<16x128xbf16>
    %c64 = arith.constant 64 : index
    %c0_35 = arith.constant 0 : index
    %26 = vector.load %arg7[%c64, %c0_35] : memref<144x128xbf16, #tpu.memory_space<vmem>>, vector<16x128xbf16>
    tpu.vector_store %arg7[%c64, %c0_35], %25 {strides = array<i32>} : memref<144x128xbf16, #tpu.memory_space<vmem>>, vector<16x128xbf16>,
    %c0_36 = arith.constant 0 : index
    %c0_37 = arith.constant 0 : index
    %c11_38 = arith.constant 11 : index
    %27 = vector.load %arg1[%c0_36, %c0_37, %c11_38] : memref<1x16x256xbf16, #tpu.memory_space<vmem>>, vector<1x16x128xbf16>
    %28 = vector.shape_cast %27 : vector<1x16x128xbf16> to vector<16x128xbf16>
    %c64_39 = arith.constant 64 : index
    %c0_40 = arith.constant 0 : index
    %29 = vector.load %arg8[%c64_39, %c0_40] : memref<144x128xbf16, #tpu.memory_space<vmem>>, vector<16x128xbf16>
    tpu.vector_store %arg8[%c64_39, %c0_40], %28 {strides = array<i32>} : memref<144x128xbf16, #tpu.memory_space<vmem>>, vector<16x128xbf16>,
    %c0_41 = arith.constant 0 : index
    %c0_42 = arith.constant 0 : index
    %c12 = arith.constant 12 : index
    %30 = vector.load %arg2[%c0_41, %c0_42, %c12] : memref<1x16x256xbf16, #tpu.memory_space<vmem>>, vector<1x16x128xbf16>
    %31 = vector.shape_cast %30 : vector<1x16x128xbf16> to vector<16x128xbf16>
    %c80 = arith.constant 80 : index
    %c0_43 = arith.constant 0 : index
    %32 = vector.load %arg7[%c80, %c0_43] : memref<144x128xbf16, #tpu.memory_space<vmem>>, vector<16x128xbf16>
    tpu.vector_store %arg7[%c80, %c0_43], %31 {strides = array<i32>} : memref<144x128xbf16, #tpu.memory_space<vmem>>, vector<16x128xbf16>,
    %c0_44 = arith.constant 0 : index
    %c0_45 = arith.constant 0 : index
    %c12_46 = arith.constant 12 : index
    %33 = vector.load %arg1[%c0_44, %c0_45, %c12_46] : memref<1x16x256xbf16, #tpu.memory_space<vmem>>, vector<1x16x128xbf16>
    %34 = vector.shape_cast %33 : vector<1x16x128xbf16> to vector<16x128xbf16>
    %c80_47 = arith.constant 80 : index
    %c0_48 = arith.constant 0 : index
    %35 = vector.load %arg8[%c80_47, %c0_48] : memref<144x128xbf16, #tpu.memory_space<vmem>>, vector<16x128xbf16>
    tpu.vector_store %arg8[%c80_47, %c0_48], %34 {strides = array<i32>} : memref<144x128xbf16, #tpu.memory_space<vmem>>, vector<16x128xbf16>,
    %c0_49 = arith.constant 0 : index
    %c0_50 = arith.constant 0 : index
    %c20 = arith.constant 20 : index
    %36 = vector.load %arg2[%c0_49, %c0_50, %c20] : memref<1x16x256xbf16, #tpu.memory_space<vmem>>, vector<1x16x128xbf16>
    %37 = vector.shape_cast %36 : vector<1x16x128xbf16> to vector<16x128xbf16>
    %c96 = arith.constant 96 : index
    %c0_51 = arith.constant 0 : index
    %38 = vector.load %arg7[%c96, %c0_51] : memref<144x128xbf16, #tpu.memory_space<vmem>>, vector<16x128xbf16>
    tpu.vector_store %arg7[%c96, %c0_51], %37 {strides = array<i32>} : memref<144x128xbf16, #tpu.memory_space<vmem>>, vector<16x128xbf16>,
    %c0_52 = arith.constant 0 : index
    %c0_53 = arith.constant 0 : index
    %c20_54 = arith.constant 20 : index
    %39 = vector.load %arg1[%c0_52, %c0_53, %c20_54] : memref<1x16x256xbf16, #tpu.memory_space<vmem>>, vector<1x16x128xbf16>
    %40 = vector.shape_cast %39 : vector<1x16x128xbf16> to vector<16x128xbf16>
    %c96_55 = arith.constant 96 : index
    %c0_56 = arith.constant 0 : index
    %41 = vector.load %arg8[%c96_55, %c0_56] : memref<144x128xbf16, #tpu.memory_space<vmem>>, vector<16x128xbf16>
    tpu.vector_store %arg8[%c96_55, %c0_56], %40 {strides = array<i32>} : memref<144x128xbf16, #tpu.memory_space<vmem>>, vector<16x128xbf16>,
    %c0_57 = arith.constant 0 : index
    %c0_58 = arith.constant 0 : index
    %c21 = arith.constant 21 : index
    %42 = vector.load %arg2[%c0_57, %c0_58, %c21] : memref<1x16x256xbf16, #tpu.memory_space<vmem>>, vector<1x16x128xbf16>
    %43 = vector.shape_cast %42 : vector<1x16x128xbf16> to vector<16x128xbf16>
    %c112 = arith.constant 112 : index
    %c0_59 = arith.constant 0 : index
    %44 = vector.load %arg7[%c112, %c0_59] : memref<144x128xbf16, #tpu.memory_space<vmem>>, vector<16x128xbf16>
    tpu.vector_store %arg7[%c112, %c0_59], %43 {strides = array<i32>} : memref<144x128xbf16, #tpu.memory_space<vmem>>, vector<16x128xbf16>,
    %c0_60 = arith.constant 0 : index
    %c0_61 = arith.constant 0 : index
    %c21_62 = arith.constant 21 : index
    %45 = vector.load %arg1[%c0_60, %c0_61, %c21_62] : memref<1x16x256xbf16, #tpu.memory_space<vmem>>, vector<1x16x128xbf16>
    %46 = vector.shape_cast %45 : vector<1x16x128xbf16> to vector<16x128xbf16>
    %c112_63 = arith.constant 112 : index
    %c0_64 = arith.constant 0 : index
    %47 = vector.load %arg8[%c112_63, %c0_64] : memref<144x128xbf16, #tpu.memory_space<vmem>>, vector<16x128xbf16>
    tpu.vector_store %arg8[%c112_63, %c0_64], %46 {strides = array<i32>} : memref<144x128xbf16, #tpu.memory_space<vmem>>, vector<16x128xbf16>,
    %c0_65 = arith.constant 0 : index
    %c0_66 = arith.constant 0 : index
    %c22 = arith.constant 22 : index
    %48 = vector.load %arg2[%c0_65, %c0_66, %c22] : memref<1x16x256xbf16, #tpu.memory_space<vmem>>, vector<1x16x128xbf16>
    %49 = vector.shape_cast %48 : vector<1x16x128xbf16> to vector<16x128xbf16>
    %c128 = arith.constant 128 : index
    %c0_67 = arith.constant 0 : index
    %50 = vector.load %arg7[%c128, %c0_67] : memref<144x128xbf16, #tpu.memory_space<vmem>>, vector<16x128xbf16>
    tpu.vector_store %arg7[%c128, %c0_67], %49 {strides = array<i32>} : memref<144x128xbf16, #tpu.memory_space<vmem>>, vector<16x128xbf16>,
    %c0_68 = arith.constant 0 : index
    %c0_69 = arith.constant 0 : index
    %c22_70 = arith.constant 22 : index
    %51 = vector.load %arg1[%c0_68, %c0_69, %c22_70] : memref<1x16x256xbf16, #tpu.memory_space<vmem>>, vector<1x16x128xbf16>
    %52 = vector.shape_cast %51 : vector<1x16x128xbf16> to vector<16x128xbf16>
    %c128_71 = arith.constant 128 : index
    %c0_72 = arith.constant 0 : index
    %53 = vector.load %arg8[%c128_71, %c0_72] : memref<144x128xbf16, #tpu.memory_space<vmem>>, vector<16x128xbf16>
    tpu.vector_store %arg8[%c128_71, %c0_72], %52 {strides = array<i32>} : memref<144x128xbf16, #tpu.memory_space<vmem>>, vector<16x128xbf16>,
    %c0_73 = arith.constant 0 : index
    %c0_74 = arith.constant 0 : index
    %54 = vector.load %arg3[%c0_73, %c0_74] : memref<16x144xbf16, #tpu.memory_space<vmem>>, vector<16x144xbf16>
    %c0_75 = arith.constant 0 : index
    %c0_76 = arith.constant 0 : index
    %55 = vector.load %arg7[%c0_75, %c0_76] : memref<144x128xbf16, #tpu.memory_space<vmem>>, vector<144x128xbf16>
    %cst = arith.constant dense<0.000000e+00> : vector<16x128xf32>
    %56 = tpu.matmul %54, %55, %cst {dimension_numbers = #tpu.dot_dimension_numbers<[1], [0], [0], [1], [0, 0, 1, 1], [], []>} : vector<16x144xbf16>, vector<144x128xbf16>, vector<16x128xf32> -> vector<16x128xf32>
    %c0_77 = arith.constant 0 : index
    %c0_78 = arith.constant 0 : index
    %57 = vector.load %arg4[%c0_77, %c0_78] : memref<16x144xbf16, #tpu.memory_space<vmem>>, vector<16x144xbf16>
    %c0_79 = arith.constant 0 : index
    %c0_80 = arith.constant 0 : index
    %58 = vector.load %arg8[%c0_79, %c0_80] : memref<144x128xbf16, #tpu.memory_space<vmem>>, vector<144x128xbf16>
    %cst_81 = arith.constant dense<0.000000e+00> : vector<16x128xf32>
    %59 = tpu.matmul %57, %58, %cst_81 {dimension_numbers = #tpu.dot_dimension_numbers<[1], [0], [0], [1], [0, 0, 1, 1], [], []>} : vector<16x144xbf16>, vector<144x128xbf16>, vector<16x128xf32> -> vector<16x128xf32>
    %c0_82 = arith.constant 0 : index
    %c0_83 = arith.constant 0 : index
    %c0_84 = arith.constant 0 : index
    %c0_85 = arith.constant 0 : index
    %60 = vector.load %arg5[%c0_82, %c0_83, %c0_84, %c0_85] : memref<1x2x16x1xf32, #tpu.memory_space<vmem>>, vector<1x1x16x1xf32>
    %61 = vector.shape_cast %60 : vector<1x1x16x1xf32> to vector<16x1xf32>
    %c0_86 = arith.constant 0 : index
    %c1_87 = arith.constant 1 : index
    %c0_88 = arith.constant 0 : index
    %c0_89 = arith.constant 0 : index
    %62 = vector.load %arg5[%c0_86, %c1_87, %c0_88, %c0_89] : memref<1x2x16x1xf32, #tpu.memory_space<vmem>>, vector<1x1x16x1xf32>
    %63 = vector.shape_cast %62 : vector<1x1x16x1xf32> to vector<16x1xf32>
    %64 = vector.broadcast %61 : vector<16x1xf32> to vector<16x128xf32>
    %65 = arith.mulf %64, %59 : vector<16x128xf32>
    %66 = arith.addf %56, %65 : vector<16x128xf32>
    %67 = vector.broadcast %63 : vector<16x1xf32> to vector<16x128xf32>
    %68 = arith.addf %66, %67 : vector<16x128xf32>
    %cst_90 = arith.constant 0.000000e+00 : f32
    %69 = vector.broadcast %cst_90 : f32 to vector<16x128xf32>
    %70 = arith.maximumf %68, %69 : vector<16x128xf32>
    %c0_91 = arith.constant 0 : index
    %c0_92 = arith.constant 0 : index
    %c0_93 = arith.constant 0 : index
    %71 = vector.load %arg6[%c0_91, %c0_92, %c0_93] : memref<1x16x128xf32, #tpu.memory_space<vmem>>, vector<1x16x128xf32>
    %72 = vector.shape_cast %71 : vector<1x16x128xf32> to vector<16x128xf32>
    %73 = vector.shape_cast %70 : vector<16x128xf32> to vector<1x16x128xf32>
    tpu.vector_store %arg6[%c0_91, %c0_92, %c0_93], %73 {strides = array<i32>} : memref<1x16x128xf32, #tpu.memory_space<vmem>>, vector<1x16x128xf32>,
    return
  }
  func.func @transform_0(%arg0: i32) -> (i32, i32, i32) {
    %c0_i32 = arith.constant 0 : i32
    %c0_i32_0 = arith.constant 0 : i32
    %c0_i32_1 = arith.constant 0 : i32
    return %arg0, %c0_i32, %c0_i32_0 : i32, i32, i32
  }
  func.func @transform_1(%arg0: i32) -> (i32, i32, i32) {
    %c0_i32 = arith.constant 0 : i32
    %c0_i32_0 = arith.constant 0 : i32
    %c0_i32_1 = arith.constant 0 : i32
    return %arg0, %c0_i32, %c0_i32_0 : i32, i32, i32
  }
  func.func @transform_2(%arg0: i32) -> (i32, i32) {
    %c0_i32 = arith.constant 0 : i32
    %c0_i32_0 = arith.constant 0 : i32
    %c0_i32_1 = arith.constant 0 : i32
    return %c0_i32, %c0_i32_0 : i32, i32
  }
  func.func @transform_3(%arg0: i32) -> (i32, i32) {
    %c0_i32 = arith.constant 0 : i32
    %c0_i32_0 = arith.constant 0 : i32
    %c0_i32_1 = arith.constant 0 : i32
    return %c0_i32, %c0_i32_0 : i32, i32
  }
  func.func @transform_4(%arg0: i32) -> (i32, i32, i32, i32) {
    %c0_i32 = arith.constant 0 : i32
    %c0_i32_0 = arith.constant 0 : i32
    %c0_i32_1 = arith.constant 0 : i32
    %c0_i32_2 = arith.constant 0 : i32
    return %arg0, %c0_i32, %c0_i32_0, %c0_i32_1 : i32, i32, i32, i32
  }
  func.func @transform_5(%arg0: i32) -> (i32, i32, i32) {
    %c0_i32 = arith.constant 0 : i32
    %c0_i32_0 = arith.constant 0 : i32
    %c0_i32_1 = arith.constant 0 : i32
    return %arg0, %c0_i32, %c0_i32_0 : i32, i32, i32
  }
}

</mosaic_0001>

<llo_original>
// kernel: tpu_custom_call.1
$region0: #{tpu_custom_call.1}
  #allocation0 [shape = 'u32[]', space=smem, size = 0x4, offset = 0x4, fixed_abs, tag = 'smem constant byte address 0x4 - core index']
  #allocation1 [shape = 'u32[144,128]{1,0:T(1,128)}', space=vmem, size = 0x12000, scoped, tag = 'internal scratch']
  #allocation2 [shape = 'bf16[144,128]{1,0:T(8,128)(2,1)}', space=vmem, size = 0x9000, scoped, tag = 'scratch operand']
  #allocation3 [shape = 'bf16[144,128]{1,0:T(8,128)(2,1)}', space=vmem, size = 0x9000, scoped, tag = 'scratch operand']
  %s0 = inlined_call_operand.vmem [shape: bf16[2,16,256], index: 0, kind: input, shape index: {}]
  %s1 = inlined_call_operand.vmem [shape: bf16[2,16,256], index: 1, kind: input, shape index: {}]
  %s2 = inlined_call_operand.hbm [shape: bf16[16,144], index: 2, kind: input, shape index: {}]
  %s3 = inlined_call_operand.hbm [shape: bf16[16,144], index: 3, kind: input, shape index: {}]
  %s4 = inlined_call_operand.vmem [shape: f32[2,2,16,1], index: 4, kind: input, shape index: {}]
  %s5 = inlined_call_operand.hbm [shape: f32[2,16,128], index: 5, kind: output, shape index: {}]
  %s6 = sld [smem:[#allocation0]]
  $region61: #{tpu_custom_call.1} parent=0
    _
  %s8 = ssub.s32 1, %s6
  %s9 = scalar_select 0, %s8, %s6
  $region1: #{tpu_custom_call.1} parent=0
    #allocation4 [shape = 'u8[8192]{0}', space=vmem, size = 0x2000, scoped, tag = 'input window, operand 2, single buffered']
    #allocation5 [shape = 's32[2]{0}', space=sflag, size = 0x8, scoped, tag = 'scoped memory for tpu_custom_call.1']
    #allocation6 [shape = 's32[2]{0}', space=sflag, size = 0x8, scoped, tag = 'scoped memory for tpu_custom_call.1']
    #allocation7 [shape = 'u8[8192]{0}', space=vmem, size = 0x2000, scoped, tag = 'input window, operand 3, single buffered']
    #allocation8 [shape = 's32[1]{0}', space=sflag, size = 0x4, scoped, tag = 'scoped memory for tpu_custom_call.1']
    #allocation9 [shape = 'u8[16384]{0}', space=vmem, size = 0x4000, scoped, tag = 'output window, operand 0']
    %10 = vsyncpa [#allocation5], 0
    %11 = vsyncpa [#allocation8], 0
    %12 = vsyncpa [#allocation6], 0
    %s13 = scalar_lea.sflag [#allocation6], 1
    %14 = vsyncpa %s13, 0
    loop: start=0, step=1, limit=4
    $region2: #{tpu_custom_call.1} parent=1 // loop_pre_header
      _
    $region3: #{tpu_custom_call.1} parent=1 // loop_header
      %s16 = sphi 0, %s20
      %p17 = scmp.ge.s32.totalorder %s16, 4
      %s26 = sphi 0, %s28
      %s29 = sphi 0, %s26
      %s30 = sphi 0, %s29
      %s46 = sphi 0, %s30
      %s52 = sphi 0, %s54
      %s55 = sphi 0, %s52
      %s56 = sphi 0, %s55
      %s72 = sphi 0, %s56
      %s76 = sphi 0, %s76
      %s78 = sphi 0, %s76
      %s79 = sphi 0, %s78
      %s93 = sphi 0, %s79
      %s97 = sphi 0, %s97
      %s99 = sphi 0, %s97
      %s100 = sphi 0, %s99
      %s114 = sphi 0, %s100
      %s120 = sphi 0, %s122
      %s123 = sphi 0, %s120
      %s124 = sphi 0, %s123
      %s140 = sphi 0, %s124
      %s146 = sphi 0, %s148
      %s149 = sphi 0, %s146
      %s150 = sphi 0, %s149
      %s166 = sphi 0, %s150
    $region4: #{tpu_custom_call.1} parent=1 // loop_header_branch
      %19 = sbr.rel (%p17) target = $region8
    $region5: #{tpu_custom_call.1} parent=1 // loop_body
      %s21 = ssub.s32 %s16, 1
      %s22 = ssub.s32 %s16, 2
      %s23 = sadd.s32 %s16, 1
      %s24 = ssub.s32 %s16, %s23
      %p25 = scmp.eq.s32.totalorder %s24, 0
      %s27 = sadd.s32 %s26, 1
      %s28 = scalar_select %p25, %s26, %s27
      %p31 = pneg %p25
      %p32 = scmp.eq.s32.totalorder %s16, 1
      %p33 = por %p31, %p32
      %p34 = scmp.ne.s32.totalorder %s26, %s29
      %p35 = scmp.eq.s32.totalorder %s16, 0
      %p36 = por %p34, %p35
      %p37 = scmp.ne.s32.totalorder %s26, %s29
      %p38 = scmp.eq.s32.totalorder %s21, 1
      %p39 = por %p37, %p38
      %p40 = scmp.ne.s32.totalorder %s29, %s30
      %p41 = scmp.eq.s32.totalorder %s21, 0
      %p42 = por %p40, %p41
      %p43 = scmp.ne.s32.totalorder %s29, %s30
      %p44 = scmp.eq.s32.totalorder %s22, 1
      %p45 = por %p43, %p44
      %p47 = scmp.ne.s32.totalorder %s30, %s46
      %p48 = scmp.eq.s32.totalorder %s22, 0
      %p49 = por %p47, %p48
      %s50 = ssub.s32 %s16, %s23
      %p51 = scmp.eq.s32.totalorder %s50, 0
      %s53 = sadd.s32 %s52, 1
      %s54 = scalar_select %p51, %s52, %s53
      %p57 = pneg %p51
      %p58 = scmp.eq.s32.totalorder %s16, 1
      %p59 = por %p57, %p58
      %p60 = scmp.ne.s32.totalorder %s52, %s55
      %p61 = scmp.eq.s32.totalorder %s16, 0
      %p62 = por %p60, %p61
      %p63 = scmp.ne.s32.totalorder %s52, %s55
      %p64 = scmp.eq.s32.totalorder %s21, 1
      %p65 = por %p63, %p64
      %p66 = scmp.ne.s32.totalorder %s55, %s56
      %p67 = scmp.eq.s32.totalorder %s21, 0
      %p68 = por %p66, %p67
      %p69 = scmp.ne.s32.totalorder %s55, %s56
      %p70 = scmp.eq.s32.totalorder %s22, 1
      %p71 = por %p69, %p70
      %p73 = scmp.ne.s32.totalorder %s56, %s72
      %p74 = scmp.eq.s32.totalorder %s22, 0
      %p75 = por %p73, %p74
      %s77 = sadd.s32 %s76, 1
      %p80 = scmp.eq.s32.totalorder %s16, 1
      %p81 = scmp.ne.s32.totalorder %s76, %s78
      %p82 = scmp.eq.s32.totalorder %s16, 0
      %p83 = por %p81, %p82
      %p84 = scmp.ne.s32.totalorder %s76, %s78
      %p85 = scmp.eq.s32.totalorder %s21, 1
      %p86 = por %p84, %p85
      %p87 = scmp.ne.s32.totalorder %s78, %s79
      %p88 = scmp.eq.s32.totalorder %s21, 0
      %p89 = por %p87, %p88
      %p90 = scmp.ne.s32.totalorder %s78, %s79
      %p91 = scmp.eq.s32.totalorder %s22, 1
      %p92 = por %p90, %p91
      %p94 = scmp.ne.s32.totalorder %s79, %s93
      %p95 = scmp.eq.s32.totalorder %s22, 0
      %p96 = por %p94, %p95
      %s98 = sadd.s32 %s97, 1
      %p101 = scmp.eq.s32.totalorder %s16, 1
      %p102 = scmp.ne.s32.totalorder %s97, %s99
      %p103 = scmp.eq.s32.totalorder %s16, 0
      %p104 = por %p102, %p103
      %p105 = scmp.ne.s32.totalorder %s97, %s99
      %p106 = scmp.eq.s32.totalorder %s21, 1
      %p107 = por %p105, %p106
      %p108 = scmp.ne.s32.totalorder %s99, %s100
      %p109 = scmp.eq.s32.totalorder %s21, 0
      %p110 = por %p108, %p109
      %p111 = scmp.ne.s32.totalorder %s99, %s100
      %p112 = scmp.eq.s32.totalorder %s22, 1
      %p113 = por %p111, %p112
      %p115 = scmp.ne.s32.totalorder %s100, %s114
      %p116 = scmp.eq.s32.totalorder %s22, 0
      %p117 = por %p115, %p116
      %s118 = ssub.s32 %s16, %s23
      %p119 = scmp.eq.s32.totalorder %s118, 0
      %s121 = sadd.s32 %s120, 1
      %s122 = scalar_select %p119, %s120, %s121
      %p125 = pneg %p119
      %p126 = scmp.eq.s32.totalorder %s16, 1
      %p127 = por %p125, %p126
      %p128 = scmp.ne.s32.totalorder %s120, %s123
      %p129 = scmp.eq.s32.totalorder %s16, 0
      %p130 = por %p128, %p129
      %p131 = scmp.ne.s32.totalorder %s120, %s123
      %p132 = scmp.eq.s32.totalorder %s21, 1
      %p133 = por %p131, %p132
      %p134 = scmp.ne.s32.totalorder %s123, %s124
      %p135 = scmp.eq.s32.totalorder %s21, 0
      %p136 = por %p134, %p135
      %p137 = scmp.ne.s32.totalorder %s123, %s124
      %p138 = scmp.eq.s32.totalorder %s22, 1
      %p139 = por %p137, %p138
      %p141 = scmp.ne.s32.totalorder %s124, %s140
      %p142 = scmp.eq.s32.totalorder %s22, 0
      %p143 = por %p141, %p142
      %s144 = ssub.s32 %s16, %s23
      %p145 = scmp.eq.s32.totalorder %s144, 0
      %s147 = sadd.s32 %s146, 1
      %s148 = scalar_select %p145, %s146, %s147
      %p151 = pneg %p145
      %p152 = scmp.eq.s32.totalorder %s16, 1
      %p153 = por %p151, %p152
      %p154 = scmp.ne.s32.totalorder %s146, %s149
      %p155 = scmp.eq.s32.totalorder %s16, 0
      %p156 = por %p154, %p155
      %p157 = scmp.ne.s32.totalorder %s146, %s149
      %p158 = scmp.eq.s32.totalorder %s21, 1
      %p159 = por %p157, %p158
      %p160 = scmp.ne.s32.totalorder %s149, %s150
      %p161 = scmp.eq.s32.totalorder %s21, 0
      %p162 = por %p160, %p161
      %p163 = scmp.ne.s32.totalorder %s149, %s150
      %p164 = scmp.eq.s32.totalorder %s22, 1
      %p165 = por %p163, %p164
      %p167 = scmp.ne.s32.totalorder %s150, %s166
      %p168 = scmp.eq.s32.totalorder %s22, 0
      %p169 = por %p167, %p168
      %p170 = scmp.le.s32.totalorder 1, %s16
      %p171 = scmp.lt.s32.totalorder %s16, 3
      %p172 = pnand %p170, %p171
      %p173 = pneg %p172
      // Predicated region
      $region9: #{tpu_custom_call.1} parent=5 // pred_check
        _
      $region10: #{tpu_custom_call.1} parent=5 // pred_check_branch
        %175 = sbr.rel (%p172) target = $region12
      $region11: #{tpu_custom_call.1} parent=5 // pred_region
        %s176 = ssub.s32 %s16, 1
        // Predicated region
        $region13: #{tpu_custom_call.1} parent=11 // pred_check
          %p177 = pneg %p89
        $region14: #{tpu_custom_call.1} parent=11 // pred_check_branch
          %179 = sbr.rel (%p177) target = $region16
        $region15: #{tpu_custom_call.1} parent=11 // pred_region
          %s181 = ssub.s32 256, 256
          %182 = vsyncadd [#allocation5], %s181
          %s183 = sshll.u32 [#allocation4], 4
          %s184 = int_to_ptr.vmem [resolvable:$true] %s183
          %189 = dma.hbm_to_vmem [thread:$0]  %s2, 256, %s184, [#allocation5], 128, 128, 8
        $region16: #{tpu_custom_call.1} parent=11 // pred_fallthru
          _
        // Predicated region
        $region17: #{tpu_custom_call.1} parent=11 // pred_check
          %p190 = pneg %p110
        $region18: #{tpu_custom_call.1} parent=11 // pred_check_branch
          %192 = sbr.rel (%p190) target = $region20
        $region19: #{tpu_custom_call.1} parent=11 // pred_region
          %s194 = ssub.s32 256, 256
          %195 = vsyncadd [#allocation8], %s194
          %s196 = sshll.u32 [#allocation7], 4
          %s197 = int_to_ptr.vmem [resolvable:$true] %s196
          %202 = dma.hbm_to_vmem [thread:$0]  %s3, 256, %s197, [#allocation8], 128, 128, 8
        $region20: #{tpu_custom_call.1} parent=11 // pred_fallthru
          _
      $region12: #{tpu_custom_call.1} parent=5 // pred_fallthru
        _
      %p203 = scmp.lt.s32.totalorder %s16, 2
      // Predicated region
      $region21: #{tpu_custom_call.1} parent=5 // pred_check
        %p204 = pneg %p203
      $region22: #{tpu_custom_call.1} parent=5 // pred_check_branch
        %206 = sbr.rel (%p204) target = $region24
      $region23: #{tpu_custom_call.1} parent=5 // pred_region
        // Predicated region
        $region25: #{tpu_custom_call.1} parent=23 // pred_check
          %p207 = pneg %p36
        $region26: #{tpu_custom_call.1} parent=23 // pred_check_branch
          %209 = sbr.rel (%p207) target = $region28
        $region27: #{tpu_custom_call.1} parent=23 // pred_region
          %p210 = scmp.lt.s32.totalorder %s16, 1
          %s211 = scalar_select %p210, %s16, 1
          %s212 = smul.addr %s211, 4
          %s213 = smul.addr %s212, 4
          %s214 = scalar_lea.vmem %s0, %s213
        $region28: #{tpu_custom_call.1} parent=23 // pred_fallthru
          _
        // Predicated region
        $region29: #{tpu_custom_call.1} parent=23 // pred_check
          %p215 = pneg %p62
        $region30: #{tpu_custom_call.1} parent=23 // pred_check_branch
          %217 = sbr.rel (%p215) target = $region32
        $region31: #{tpu_custom_call.1} parent=23 // pred_region
          %p218 = scmp.lt.s32.totalorder %s16, 1
          %s219 = scalar_select %p218, %s16, 1
          %s220 = smul.addr %s219, 4
          %s221 = smul.addr %s220, 4
          %s222 = scalar_lea.vmem %s1, %s221
        $region32: #{tpu_custom_call.1} parent=23 // pred_fallthru
          _
        // Predicated region
        $region33: #{tpu_custom_call.1} parent=23 // pred_check
          %p223 = pneg %p130
        $region34: #{tpu_custom_call.1} parent=23 // pred_check_branch
          %225 = sbr.rel (%p223) target = $region36
        $region35: #{tpu_custom_call.1} parent=23 // pred_region
          %p226 = scmp.lt.s32.totalorder %s16, 1
          %s227 = scalar_select %p226, %s16, 1
          %s228 = smul.addr %s227, 4
          %s229 = smul.addr %s228, 8
          %s230 = scalar_lea.vmem %s4, %s229
        $region36: #{tpu_custom_call.1} parent=23 // pred_fallthru
          _
      $region24: #{tpu_custom_call.1} parent=5 // pred_fallthru
        _
      %p231 = scmp.le.s32.totalorder 1, %s16
      %p232 = scmp.lt.s32.totalorder %s16, 3
      %p233 = pnand %p231, %p232
      %p234 = pneg %p233
      // Predicated region
      $region37: #{tpu_custom_call.1} parent=5 // pred_check
        _
      $region38: #{tpu_custom_call.1} parent=5 // pred_check_branch
        %236 = sbr.rel (%p233) target = $region40
      $region39: #{tpu_custom_call.1} parent=5 // pred_region
        %s237 = ssub.s32 %s16, 1
        // Predicated region
        $region41: #{tpu_custom_call.1} parent=39 // pred_check
          %p238 = pneg %p89
        $region42: #{tpu_custom_call.1} parent=39 // pred_check_branch
          %240 = sbr.rel (%p238) target = $region44
        $region43: #{tpu_custom_call.1} parent=39 // pred_region
          %241 = dma.done [#allocation5], 256
        $region44: #{tpu_custom_call.1} parent=39 // pred_fallthru
          _
        // Predicated region
        $region45: #{tpu_custom_call.1} parent=39 // pred_check
          %p242 = pneg %p110
        $region46: #{tpu_custom_call.1} parent=39 // pred_check_branch
          %244 = sbr.rel (%p242) target = $region48
        $region47: #{tpu_custom_call.1} parent=39 // pred_region
          %245 = dma.done [#allocation8], 256
        $region48: #{tpu_custom_call.1} parent=39 // pred_fallthru
          _
        %p246 = scmp.lt.s32.totalorder %s21, 1
        %s247 = scalar_select %p246, %s21, 1
        %s248 = smul.addr %s247, 4
        %s249 = smul.addr %s248, 4
        %s250 = scalar_lea.vmem %s0, %s249
        %p251 = pneg %p42
        %p252 = pneg %p39
        %p253 = scmp.lt.s32.totalorder %s21, 1
        %s254 = scalar_select %p253, %s21, 1
        %s255 = smul.addr %s254, 4
        %s256 = smul.addr %s255, 4
        %s257 = scalar_lea.vmem %s1, %s256
        %p258 = pneg %p68
        %p259 = pneg %p65
        %p260 = pneg %p89
        %p261 = pneg %p86
        %p262 = pneg %p110
        %p263 = pneg %p107
        %p264 = scmp.lt.s32.totalorder %s21, 1
        %s265 = scalar_select %p264, %s21, 1
        %s266 = smul.addr %s265, 4
        %s267 = smul.addr %s266, 8
        %s268 = scalar_lea.vmem %s4, %s267
        %p269 = pneg %p136
        %p270 = pneg %p133
        %p271 = pneg %p162
        %p272 = pneg %p159
        %s273 = sand.u32 %s149, 1
        %s274 = scalar_lea.sflag [#allocation6], %s273
        %s275 = sand.u32 %s149, 1
        %s276 = smul.addr %s275, 16
        %s277 = scalar_lea.vmem [#allocation9], %s276
        %p278 = scmp.lt.s32.totalorder %s21, 1
        %s279 = scalar_select %p278, %s21, 1
        %s280 = smul.addr %s279, 4
        %s281 = smul.addr %s280, 4
        %s282 = scalar_lea.vmem %s0, %s281
        %p283 = scmp.lt.s32.totalorder %s21, 1
        %s284 = scalar_select %p283, %s21, 1
        %s285 = smul.addr %s284, 4
        %s286 = smul.addr %s285, 4
        %s287 = scalar_lea.vmem %s1, %s286
        %p288 = scmp.lt.s32.totalorder %s21, 1
        %s289 = scalar_select %p288, %s21, 1
        %s290 = smul.addr %s289, 4
        %s291 = smul.addr %s290, 8
        %s292 = scalar_lea.vmem %s4, %s291
        %v294 = vld [vmem:[%s287] sm:$0xf]
        %v295 = vld [vmem:[%s287 + $0x8] sm:$0xf]
        %296 = vst [vmem:[#allocation2] sm:$0xf] %v294
        %297 = vst [vmem:[#allocation2 + $0x4] sm:$0xf] %v295
        %v298 = vld [vmem:[%s282] sm:$0xf]
        %v299 = vld [vmem:[%s282 + $0x8] sm:$0xf]
        %300 = vst [vmem:[#allocation3] sm:$0xf] %v298
        %301 = vst [vmem:[#allocation3 + $0x4] sm:$0xf] %v299
        %v302 = vld [vmem:[%s287] sm:$0xff]
        %v303 = vld [vmem:[%s287 + $0x8] sm:$0xff]
        %306 = vrot.lane.b32.xlu0 %v302, 127
        %v307 = vpop.permute.xlu0 %306
        %308 = vrot.lane.b32.xlu0 %v303, 127
        %v309 = vpop.permute.xlu0 %308
        %v310 = vrot.slane %v307, 4
        %v311 = vrot.slane %v309, 4
        %vm312 = vcmask 1039360
        %v313 = vsel %vm312, %v307, %v310
        %v314 = vsel %vm312, %v309, %v311
        %317 = vst [vmem:[#allocation2 + $0x8] sm:$0xf] %v313
        %318 = vst [vmem:[#allocation2 + $0xc] sm:$0xf] %v314
        %v319 = vld [vmem:[%s282] sm:$0xff]
        %v320 = vld [vmem:[%s282 + $0x8] sm:$0xff]
        %323 = vrot.lane.b32.xlu0 %v319, 127
        %v324 = vpop.permute.xlu0 %323
        %325 = vrot.lane.b32.xlu0 %v320, 127
        %v326 = vpop.permute.xlu0 %325
        %v327 = vrot.slane %v324, 4
        %v328 = vrot.slane %v326, 4
        %v329 = vsel %vm312, %v324, %v327
        %v330 = vsel %vm312, %v326, %v328
        %333 = vst [vmem:[#allocation3 + $0x8] sm:$0xf] %v329
        %334 = vst [vmem:[#allocation3 + $0xc] sm:$0xf] %v330
        %v335 = vld [vmem:[%s287] sm:$0xff]
        %v336 = vld [vmem:[%s287 + $0x8] sm:$0xff]
        %339 = vrot.lane.b32.xlu0 %v335, 126
        %v340 = vpop.permute.xlu0 %339
        %341 = vrot.lane.b32.xlu0 %v336, 126
        %v342 = vpop.permute.xlu0 %341
        %v343 = vrot.slane %v340, 4
        %v344 = vrot.slane %v342, 4
        %vm345 = vcmask 1031168
        %v346 = vsel %vm345, %v340, %v343
        %v347 = vsel %vm345, %v342, %v344
        %350 = vst [vmem:[#allocation2 + $0x10] sm:$0xf] %v346
        %351 = vst [vmem:[#allocation2 + $0x14] sm:$0xf] %v347
        %v352 = vld [vmem:[%s282] sm:$0xff]
        %v353 = vld [vmem:[%s282 + $0x8] sm:$0xff]
        %356 = vrot.lane.b32.xlu0 %v352, 126
        %v357 = vpop.permute.xlu0 %356
        %358 = vrot.lane.b32.xlu0 %v353, 126
        %v359 = vpop.permute.xlu0 %358
        %v360 = vrot.slane %v357, 4
        %v361 = vrot.slane %v359, 4
        %v362 = vsel %vm345, %v357, %v360
        %v363 = vsel %vm345, %v359, %v361
        %366 = vst [vmem:[#allocation3 + $0x10] sm:$0xf] %v362
        %367 = vst [vmem:[#allocation3 + $0x14] sm:$0xf] %v363
        %v368 = vld [vmem:[%s287] sm:$0xff]
        %v369 = vld [vmem:[%s287 + $0x8] sm:$0xff]
        %372 = vrot.lane.b32.xlu0 %v368, 118
        %v373 = vpop.permute.xlu0 %372
        %374 = vrot.lane.b32.xlu0 %v369, 118
        %v375 = vpop.permute.xlu0 %374
        %v376 = vrot.slane %v373, 4
        %v377 = vrot.slane %v375, 4
        %vm378 = vcmask 965632
        %v379 = vsel %vm378, %v373, %v376
        %v380 = vsel %vm378, %v375, %v377
        %383 = vst [vmem:[#allocation2 + $0x18] sm:$0xf] %v379
        %384 = vst [vmem:[#allocation2 + $0x1c] sm:$0xf] %v380
        %v385 = vld [vmem:[%s282] sm:$0xff]
        %v386 = vld [vmem:[%s282 + $0x8] sm:$0xff]
        %389 = vrot.lane.b32.xlu0 %v385, 118
        %v390 = vpop.permute.xlu0 %389
        %391 = vrot.lane.b32.xlu0 %v386, 118
        %v392 = vpop.permute.xlu0 %391
        %v393 = vrot.slane %v390, 4
        %v394 = vrot.slane %v392, 4
        %v395 = vsel %vm378, %v390, %v393
        %v396 = vsel %vm378, %v392, %v394
        %399 = vst [vmem:[#allocation3 + $0x18] sm:$0xf] %v395
        %400 = vst [vmem:[#allocation3 + $0x1c] sm:$0xf] %v396
        %v401 = vld [vmem:[%s287] sm:$0xff]
        %v402 = vld [vmem:[%s287 + $0x8] sm:$0xff]
        %405 = vrot.lane.b32.xlu0 %v401, 117
        %v406 = vpop.permute.xlu0 %405
        %407 = vrot.lane.b32.xlu0 %v402, 117
        %v408 = vpop.permute.xlu0 %407
        %v409 = vrot.slane %v406, 4
        %v410 = vrot.slane %v408, 4
        %vm411 = vcmask 957440
        %v412 = vsel %vm411, %v406, %v409
        %v413 = vsel %vm411, %v408, %v410
        %416 = vst [vmem:[#allocation2 + $0x20] sm:$0xf] %v412
        %417 = vst [vmem:[#allocation2 + $0x24] sm:$0xf] %v413
        %v418 = vld [vmem:[%s282] sm:$0xff]
        %v419 = vld [vmem:[%s282 + $0x8] sm:$0xff]
        %422 = vrot.lane.b32.xlu0 %v418, 117
        %v423 = vpop.permute.xlu0 %422
        %424 = vrot.lane.b32.xlu0 %v419, 117
        %v425 = vpop.permute.xlu0 %424
        %v426 = vrot.slane %v423, 4
        %v427 = vrot.slane %v425, 4
        %v428 = vsel %vm411, %v423, %v426
        %v429 = vsel %vm411, %v425, %v427
        %432 = vst [vmem:[#allocation3 + $0x20] sm:$0xf] %v428
        %433 = vst [vmem:[#allocation3 + $0x24] sm:$0xf] %v429
        %v434 = vld [vmem:[%s287] sm:$0xff]
        %v435 = vld [vmem:[%s287 + $0x8] sm:$0xff]
        %438 = vrot.lane.b32.xlu0 %v434, 116
        %v439 = vpop.permute.xlu0 %438
        %440 = vrot.lane.b32.xlu0 %v435, 116
        %v441 = vpop.permute.xlu0 %440
        %v442 = vrot.slane %v439, 4
        %v443 = vrot.slane %v441, 4
        %vm444 = vcmask 949248
        %v445 = vsel %vm444, %v439, %v442
        %v446 = vsel %vm444, %v441, %v443
        %449 = vst [vmem:[#allocation2 + $0x28] sm:$0xf] %v445
        %450 = vst [vmem:[#allocation2 + $0x2c] sm:$0xf] %v446
        %v451 = vld [vmem:[%s282] sm:$0xff]
        %v452 = vld [vmem:[%s282 + $0x8] sm:$0xff]
        %455 = vrot.lane.b32.xlu0 %v451, 116
        %v456 = vpop.permute.xlu0 %455
        %457 = vrot.lane.b32.xlu0 %v452, 116
        %v458 = vpop.permute.xlu0 %457
        %v459 = vrot.slane %v456, 4
        %v460 = vrot.slane %v458, 4
        %v461 = vsel %vm444, %v456, %v459
        %v462 = vsel %vm444, %v458, %v460
        %465 = vst [vmem:[#allocation3 + $0x28] sm:$0xf] %v461
        %466 = vst [vmem:[#allocation3 + $0x2c] sm:$0xf] %v462
        %v467 = vld [vmem:[%s287] sm:$0xff]
        %v468 = vld [vmem:[%s287 + $0x8] sm:$0xff]
        %471 = vrot.lane.b32.xlu0 %v467, 108
        %v472 = vpop.permute.xlu0 %471
        %473 = vrot.lane.b32.xlu0 %v468, 108
        %v474 = vpop.permute.xlu0 %473
        %v475 = vrot.slane %v472, 4
        %v476 = vrot.slane %v474, 4
        %vm477 = vcmask 883712
        %v478 = vsel %vm477, %v472, %v475
        %v479 = vsel %vm477, %v474, %v476
        %482 = vst [vmem:[#allocation2 + $0x30] sm:$0xf] %v478
        %483 = vst [vmem:[#allocation2 + $0x34] sm:$0xf] %v479
        %v484 = vld [vmem:[%s282] sm:$0xff]
        %v485 = vld [vmem:[%s282 + $0x8] sm:$0xff]
        %488 = vrot.lane.b32.xlu0 %v484, 108
        %v489 = vpop.permute.xlu0 %488
        %490 = vrot.lane.b32.xlu0 %v485, 108
        %v491 = vpop.permute.xlu0 %490
        %v492 = vrot.slane %v489, 4
        %v493 = vrot.slane %v491, 4
        %v494 = vsel %vm477, %v489, %v492
        %v495 = vsel %vm477, %v491, %v493
        %498 = vst [vmem:[#allocation3 + $0x30] sm:$0xf] %v494
        %499 = vst [vmem:[#allocation3 + $0x34] sm:$0xf] %v495
        %v500 = vld [vmem:[%s287] sm:$0xff]
        %v501 = vld [vmem:[%s287 + $0x8] sm:$0xff]
        %504 = vrot.lane.b32.xlu0 %v500, 107
        %v505 = vpop.permute.xlu0 %504
        %506 = vrot.lane.b32.xlu0 %v501, 107
        %v507 = vpop.permute.xlu0 %506
        %v508 = vrot.slane %v505, 4
        %v509 = vrot.slane %v507, 4
        %vm510 = vcmask 875520
        %v511 = vsel %vm510, %v505, %v508
        %v512 = vsel %vm510, %v507, %v509
        %515 = vst [vmem:[#allocation2 + $0x38] sm:$0xf] %v511
        %516 = vst [vmem:[#allocation2 + $0x3c] sm:$0xf] %v512
        %v517 = vld [vmem:[%s282] sm:$0xff]
        %v518 = vld [vmem:[%s282 + $0x8] sm:$0xff]
        %521 = vrot.lane.b32.xlu0 %v517, 107
        %v522 = vpop.permute.xlu0 %521
        %523 = vrot.lane.b32.xlu0 %v518, 107
        %v524 = vpop.permute.xlu0 %523
        %v525 = vrot.slane %v522, 4
        %v526 = vrot.slane %v524, 4
        %v527 = vsel %vm510, %v522, %v525
        %v528 = vsel %vm510, %v524, %v526
        %531 = vst [vmem:[#allocation3 + $0x38] sm:$0xf] %v527
        %532 = vst [vmem:[#allocation3 + $0x3c] sm:$0xf] %v528
        %v533 = vld [vmem:[%s287] sm:$0xff]
        %v534 = vld [vmem:[%s287 + $0x8] sm:$0xff]
        %537 = vrot.lane.b32.xlu0 %v533, 106
        %v538 = vpop.permute.xlu0 %537
        %539 = vrot.lane.b32.xlu0 %v534, 106
        %v540 = vpop.permute.xlu0 %539
        %v541 = vrot.slane %v538, 4
        %v542 = vrot.slane %v540, 4
        %vm543 = vcmask 867328
        %v544 = vsel %vm543, %v538, %v541
        %v545 = vsel %vm543, %v540, %v542
        %548 = vst [vmem:[#allocation2 + $0x40] sm:$0xf] %v544
        %549 = vst [vmem:[#allocation2 + $0x44] sm:$0xf] %v545
        %v550 = vld [vmem:[%s282] sm:$0xff]
        %v551 = vld [vmem:[%s282 + $0x8] sm:$0xff]
        %554 = vrot.lane.b32.xlu0 %v550, 106
        %v555 = vpop.permute.xlu0 %554
        %556 = vrot.lane.b32.xlu0 %v551, 106
        %v557 = vpop.permute.xlu0 %556
        %v558 = vrot.slane %v555, 4
        %v559 = vrot.slane %v557, 4
        %v560 = vsel %vm543, %v555, %v558
        %v561 = vsel %vm543, %v557, %v559
        %564 = vst [vmem:[#allocation3 + $0x40] sm:$0xf] %v560
        %565 = vst [vmem:[#allocation3 + $0x44] sm:$0xf] %v561
        %v566 = vld [vmem:[#allocation4] sm:$0xff]
        %v567 = vld [vmem:[#allocation4 + $0x8] sm:$0xff]
        %v568 = vld [vmem:[#allocation2] sm:$0xf]
        %v569 = vld [vmem:[#allocation2 + $0x4] sm:$0xf]
        %v570 = vld [vmem:[#allocation2 + $0x8] sm:$0xf]
        %v571 = vld [vmem:[#allocation2 + $0xc] sm:$0xf]
        %v572 = vld [vmem:[#allocation2 + $0x10] sm:$0xf]
        %v573 = vld [vmem:[#allocation2 + $0x14] sm:$0xf]
        %v574 = vld [vmem:[#allocation2 + $0x18] sm:$0xf]
        %v575 = vld [vmem:[#allocation2 + $0x1c] sm:$0xf]
        %v576 = vld [vmem:[#allocation2 + $0x20] sm:$0xf]
        %v577 = vld [vmem:[#allocation2 + $0x24] sm:$0xf]
        %v578 = vld [vmem:[#allocation2 + $0x28] sm:$0xf]
        %v579 = vld [vmem:[#allocation2 + $0x2c] sm:$0xf]
        %v580 = vld [vmem:[#allocation2 + $0x30] sm:$0xf]
        %v581 = vld [vmem:[#allocation2 + $0x34] sm:$0xf]
        %v582 = vld [vmem:[#allocation2 + $0x38] sm:$0xf]
        %v583 = vld [vmem:[#allocation2 + $0x3c] sm:$0xf]
        %v584 = vld [vmem:[#allocation2 + $0x40] sm:$0xf]
        %v585 = vld [vmem:[#allocation2 + $0x44] sm:$0xf]
        %v586 = vld [vmem:[#allocation7] sm:$0xff]
        %v587 = vld [vmem:[#allocation7 + $0x8] sm:$0xff]
        %v588 = vld [vmem:[#allocation3] sm:$0xf]
        %v589 = vld [vmem:[#allocation3 + $0x4] sm:$0xf]
        %v590 = vld [vmem:[#allocation3 + $0x8] sm:$0xf]
        %v591 = vld [vmem:[#allocation3 + $0xc] sm:$0xf]
        %v592 = vld [vmem:[#allocation3 + $0x10] sm:$0xf]
        %v593 = vld [vmem:[#allocation3 + $0x14] sm:$0xf]
        %v594 = vld [vmem:[#allocation3 + $0x18] sm:$0xf]
        %v595 = vld [vmem:[#allocation3 + $0x1c] sm:$0xf]
        %v596 = vld [vmem:[#allocation3 + $0x20] sm:$0xf]
        %v597 = vld [vmem:[#allocation3 + $0x24] sm:$0xf]
        %v598 = vld [vmem:[#allocation3 + $0x28] sm:$0xf]
        %v599 = vld [vmem:[#allocation3 + $0x2c] sm:$0xf]
        %v600 = vld [vmem:[#allocation3 + $0x30] sm:$0xf]
        %v601 = vld [vmem:[#allocation3 + $0x34] sm:$0xf]
        %v602 = vld [vmem:[#allocation3 + $0x38] sm:$0xf]
        %v603 = vld [vmem:[#allocation3 + $0x3c] sm:$0xf]
        %v604 = vld [vmem:[#allocation3 + $0x40] sm:$0xf]
        %v605 = vld [vmem:[#allocation3 + $0x44] sm:$0xf]
        %v608 = vunpack.c.l.b16 %v586
        %v609 = vunpack.c.h.b16 %v586
        %v610 = vunpack.c.l.b16 %v587
        %v611 = vunpack.c.h.b16 %v587
        %v612 = vpack.c.b16 %v610, %v608
        %v613 = vpack.c.b16 %v611, %v609
        %v633 = vunpack.c.l.b16 %v588
        %v634 = vunpack.c.l.b16 %v589
        %v635 = vunpack.c.l.b16 %v590
        %v636 = vunpack.c.l.b16 %v591
        %v637 = vunpack.c.l.b16 %v592
        %v638 = vunpack.c.l.b16 %v593
        %v639 = vunpack.c.l.b16 %v594
        %v640 = vunpack.c.l.b16 %v595
        %v641 = vunpack.c.l.b16 %v596
        %v642 = vunpack.c.l.b16 %v597
        %v643 = vunpack.c.l.b16 %v598
        %v644 = vunpack.c.l.b16 %v599
        %v645 = vunpack.c.l.b16 %v600
        %v646 = vunpack.c.l.b16 %v601
        %v647 = vunpack.c.l.b16 %v602
        %v648 = vunpack.c.l.b16 %v603
        %v649 = vunpack.c.l.b16 %v604
        %v650 = vunpack.c.l.b16 %v605
        %v651 = vpack.c.b16 %v634, %v633
        %v652 = vpack.c.b16 %v636, %v635
        %v653 = vpack.c.b16 %v638, %v637
        %v654 = vpack.c.b16 %v640, %v639
        %v655 = vpack.c.b16 %v642, %v641
        %v656 = vpack.c.b16 %v644, %v643
        %v657 = vpack.c.b16 %v646, %v645
        %v658 = vpack.c.b16 %v648, %v647
        %v659 = vpack.c.b16 %v650, %v649
        %vm669 = vcmask 130048
        %v671 = vsel %vm669, %v613, 0
        %673 = vmatprep.subr.bf16.mxu0 0
        %674 = vmatpush1.bf16.msra.mxu0 %v658
        %675 = vmatprep.subr.bf16.mxu0 0
        %676 = vmatpush1.bf16.msra.mxu0 %v657
        %677 = vmatprep.subr.bf16.mxu0 0
        %678 = vmatpush1.bf16.msra.mxu0 %v656
        %679 = vmatprep.subr.bf16.mxu0 0
        %680 = vmatpush1.bf16.msra.mxu0 %v655
        %681 = vmatprep.subr.bf16.mxu0 0
        %682 = vmatpush1.bf16.msra.mxu0 %v654
        %683 = vmatprep.subr.bf16.mxu0 0
        %684 = vmatpush1.bf16.msra.mxu0 %v653
        %685 = vmatprep.subr.bf16.mxu0 0
        %686 = vmatpush1.bf16.msra.mxu0 %v652
        %687 = vmatprep.subr.bf16.mxu0 0
        %688 = vmatpush1.bf16.msra.mxu0 %v651
        %689 = vmatprep.subr.bf16.mxu0 0
        %690 = vmatpush2.bf16.msra.mxu0 0
        %691 = vmatprep.subr.bf16.mxu0 0
        %692 = vmatpush2.bf16.msra.mxu0 0
        %693 = vmatprep.subr.bf16.mxu0 0
        %694 = vmatpush2.bf16.msra.mxu0 0
        %695 = vmatprep.subr.bf16.mxu0 0
        %696 = vmatpush2.bf16.msra.mxu0 0
        %697 = vmatprep.subr.bf16.mxu0 0
        %698 = vmatpush2.bf16.msra.mxu0 0
        %699 = vmatprep.subr.bf16.mxu0 0
        %700 = vmatpush2.bf16.msra.mxu0 0
        %701 = vmatprep.subr.bf16.mxu0 0
        %702 = vmatpush2.bf16.msra.mxu0 0
        %703 = vmatprep.subr.bf16.mxu0 0
        %704 = vmatpush2.bf16.msra.mxu0 %v659
        %705 = vmatprep.mubr.bf16.mxu0 %v671
        %706 = vmatmul.mubr.bf16.gmra.mxu0 %v612
        %v707 = vpop.f32.mrf.mxu0
        %v708 = vadd.f32 0.0, %v707
        %v709 = vpop.f32.mrf.mxu0
        %v710 = vpop.f32.mrf.mxu0
        %v711 = vadd.f32 0.0, %v710
        %v712 = vpop.f32.mrf.mxu0
        %713 = vdwg.mxu0
        %v714 = vld [vmem:[%s292] sm:$0xff]
        %v715 = vld [vmem:[%s292 + $0x8] sm:$0xff]
        %s716 = scalar_lea.vmem %s292, 16
        %v717 = vld [vmem:[%s716] sm:$0xff]
        %v718 = vld [vmem:[%s716 + $0x8] sm:$0xff]
        %720 = vset.pattern.permute.xlu0 0
        %721 = vperm.xlu0 %720, %v714
        %v722 = vpop.permute.xlu0 %721
        %725 = vset.pattern.permute.xlu0 0
        %726 = vperm.xlu0 %725, %v715
        %v727 = vpop.permute.xlu0 %726
        %v729 = vmul.f32 %v722, %v708
        %v730 = vmul.f32 %v727, %v711
        %v733 = vunpack.c.l.b16 %v566
        %v734 = vunpack.c.h.b16 %v566
        %v735 = vunpack.c.l.b16 %v567
        %v736 = vunpack.c.h.b16 %v567
        %v737 = vpack.c.b16 %v735, %v733
        %v738 = vpack.c.b16 %v736, %v734
        %v758 = vunpack.c.l.b16 %v568
        %v759 = vunpack.c.l.b16 %v569
        %v760 = vunpack.c.l.b16 %v570
        %v761 = vunpack.c.l.b16 %v571
        %v762 = vunpack.c.l.b16 %v572
        %v763 = vunpack.c.l.b16 %v573
        %v764 = vunpack.c.l.b16 %v574
        %v765 = vunpack.c.l.b16 %v575
        %v766 = vunpack.c.l.b16 %v576
        %v767 = vunpack.c.l.b16 %v577
        %v768 = vunpack.c.l.b16 %v578
        %v769 = vunpack.c.l.b16 %v579
        %v770 = vunpack.c.l.b16 %v580
        %v771 = vunpack.c.l.b16 %v581
        %v772 = vunpack.c.l.b16 %v582
        %v773 = vunpack.c.l.b16 %v583
        %v774 = vunpack.c.l.b16 %v584
        %v775 = vunpack.c.l.b16 %v585
        %v776 = vpack.c.b16 %v759, %v758
        %v777 = vpack.c.b16 %v761, %v760
        %v778 = vpack.c.b16 %v763, %v762
        %v779 = vpack.c.b16 %v765, %v764
        %v780 = vpack.c.b16 %v767, %v766
        %v781 = vpack.c.b16 %v769, %v768
        %v782 = vpack.c.b16 %v771, %v770
        %v783 = vpack.c.b16 %v773, %v772
        %v784 = vpack.c.b16 %v775, %v774
        %v795 = vsel %vm669, %v738, 0
        %797 = vmatprep.subr.bf16.mxu0 0
        %798 = vmatpush1.bf16.msra.mxu0 %v783
        %799 = vmatprep.subr.bf16.mxu0 0
        %800 = vmatpush1.bf16.msra.mxu0 %v782
        %801 = vmatprep.subr.bf16.mxu0 0
        %802 = vmatpush1.bf16.msra.mxu0 %v781
        %803 = vmatprep.subr.bf16.mxu0 0
        %804 = vmatpush1.bf16.msra.mxu0 %v780
        %805 = vmatprep.subr.bf16.mxu0 0
        %806 = vmatpush1.bf16.msra.mxu0 %v779
        %807 = vmatprep.subr.bf16.mxu0 0
        %808 = vmatpush1.bf16.msra.mxu0 %v778
        %809 = vmatprep.subr.bf16.mxu0 0
        %810 = vmatpush1.bf16.msra.mxu0 %v777
        %811 = vmatprep.subr.bf16.mxu0 0
        %812 = vmatpush1.bf16.msra.mxu0 %v776
        %813 = vmatprep.subr.bf16.mxu0 0
        %814 = vmatpush2.bf16.msra.mxu0 0
        %815 = vmatprep.subr.bf16.mxu0 0
        %816 = vmatpush2.bf16.msra.mxu0 0
        %817 = vmatprep.subr.bf16.mxu0 0
        %818 = vmatpush2.bf16.msra.mxu0 0
        %819 = vmatprep.subr.bf16.mxu0 0
        %820 = vmatpush2.bf16.msra.mxu0 0
        %821 = vmatprep.subr.bf16.mxu0 0
        %822 = vmatpush2.bf16.msra.mxu0 0
        %823 = vmatprep.subr.bf16.mxu0 0
        %824 = vmatpush2.bf16.msra.mxu0 0
        %825 = vmatprep.subr.bf16.mxu0 0
        %826 = vmatpush2.bf16.msra.mxu0 0
        %827 = vmatprep.subr.bf16.mxu0 0
        %828 = vmatpush2.bf16.msra.mxu0 %v784
        %829 = vmatprep.mubr.bf16.mxu0 %v795
        %830 = vmatmul.mubr.bf16.gmra.mxu0 %v737
        %v831 = vpop.f32.mrf.mxu0
        %v832 = vadd.f32 %v729, %v831
        %v833 = vpop.f32.mrf.mxu0
        %v834 = vpop.f32.mrf.mxu0
        %v835 = vadd.f32 %v730, %v834
        %v836 = vpop.f32.mrf.mxu0
        %837 = vdwg.mxu0
        %839 = vset.pattern.permute.xlu0 0
        %840 = vperm.xlu0 %839, %v717
        %v841 = vpop.permute.xlu0 %840
        %844 = vset.pattern.permute.xlu0 0
        %845 = vperm.xlu0 %844, %v718
        %v846 = vpop.permute.xlu0 %845
        %v848 = vadd.f32 %v832, %v841
        %v849 = vadd.f32 %v835, %v846
        %v850 = vmax.f32 %v848, 0.0
        %v851 = vmax.f32 %v849, 0.0
        %852 = vst [vmem:[%s277] sm:$0xff] %v850
        %853 = vst [vmem:[%s277 + $0x8] sm:$0xff] %v851
        %s854 = sand.u32 %s149, 1
        %s855 = scalar_lea.sflag [#allocation6], %s854
        %s856 = sand.u32 %s149, 1
        %s857 = smul.addr %s856, 16
        %s858 = scalar_lea.vmem [#allocation9], %s857
        // Predicated region
        $region49: #{tpu_custom_call.1} parent=39 // pred_check
          %p859 = pneg %p159
        $region50: #{tpu_custom_call.1} parent=39 // pred_check_branch
          %861 = sbr.rel (%p859) target = $region52
        $region51: #{tpu_custom_call.1} parent=39 // pred_region
          %s863 = ssub.s32 256, 256
          %864 = vsyncadd %s855, %s863
          %s865 = smul.addr %s21, 2
          %s866 = smul.addr %s865, 128
          %s867 = scalar_lea.hbm %s5, %s866
          %s868 = sshll.u32 %s858, 4
          %s869 = int_to_ptr.vmem [resolvable:$true] %s868
          %874 = dma.vmem_to_hbm [thread:$0]  %s869, 256, %s867, %s855, 128, 128, 8
        $region52: #{tpu_custom_call.1} parent=39 // pred_fallthru
          _
      $region40: #{tpu_custom_call.1} parent=5 // pred_fallthru
        _
      %p875 = scmp.le.s32.totalorder 2, %s16
      // Predicated region
      $region53: #{tpu_custom_call.1} parent=5 // pred_check
        %p876 = pneg %p875
      $region54: #{tpu_custom_call.1} parent=5 // pred_check_branch
        %878 = sbr.rel (%p876) target = $region56
      $region55: #{tpu_custom_call.1} parent=5 // pred_region
        %s879 = ssub.s32 %s16, 2
        // Predicated region
        $region57: #{tpu_custom_call.1} parent=55 // pred_check
          %p880 = pneg %p165
        $region58: #{tpu_custom_call.1} parent=55 // pred_check_branch
          %882 = sbr.rel (%p880) target = $region60
        $region59: #{tpu_custom_call.1} parent=55 // pred_region
          %s883 = sand.u32 %s150, 1
          %s884 = scalar_lea.sflag [#allocation6], %s883
          %s885 = sand.u32 %s150, 1
          %s886 = smul.addr %s885, 16
          %s887 = scalar_lea.vmem [#allocation9], %s886
          %888 = dma.done %s884, 256
        $region60: #{tpu_custom_call.1} parent=55 // pred_fallthru
          _
      $region56: #{tpu_custom_call.1} parent=5 // pred_fallthru
        _
    $region6: #{tpu_custom_call.1} parent=1 // loop_footer
      %s20 = sadd.s32 1, %s16
    $region7: #{tpu_custom_call.1} parent=1 // loop_footer_branch
      %15 = sbr.rel target = $region3
    $region8: #{tpu_custom_call.1} parent=1 // loop_exit
      _
    %889 = vsyncpa [#allocation5], 1
    %s890 = scalar_lea.sflag [#allocation5], 1
    %891 = vsyncpa %s890, 1
    %892 = vsyncpa [#allocation8], 1
    %893 = vsyncpa [#allocation6], 1
    %s894 = scalar_lea.sflag [#allocation6], 1
    %895 = vsyncpa %s894, 1

</llo_original>
